<compile_context>
chip_gen: v6e
topology: v6e:2x2x1
jax: 0.10.0
libtpu: 0.0.40
codegen_flags: <defaults>
</compile_context>

<pallas_src>
import jax
import jax.numpy as jnp
from jax.experimental import pallas as pl
from jax.experimental.pallas import tpu as pltpu


def _layer_scale_kernel(x_ref, gamma_ref, o_ref):
    # x_ref: (row_tile, lane_dim) block of flattened tokens.
    # gamma_ref: (1, lane_dim); broadcast over the sublane (row) axis by the VPU.
    # Multiply in the promoted dtype (gamma stays f32), cast once on store.
    o_ref[...] = (x_ref[...] * gamma_ref[...]).astype(o_ref.dtype)


def _sublane_multiple(dtype) -> int:
    # Rows per vreg: 8 for 32-bit, 16 for 16-bit, 32 for 8-bit dtypes.
    itemsize = jnp.dtype(dtype).itemsize
    return max(8, 32 // max(itemsize, 1))


def layer_scale(x: jax.Array, gamma: jax.Array) -> jax.Array:
    """Applies y = x * gamma where gamma has shape (dim,) == x.shape[-1]."""
    orig_shape = x.shape
    dim = orig_shape[-1]
    assert gamma.shape == (dim,), "gamma must match the last dim of x"

    x2 = x.reshape(-1, dim)  # (rows, dim)
    rows = x2.shape[0]

    # ---- lane-dense layout: if dim < 128, fold k rows into the lane axis so the
    #      output last dim is a multiple of 128 (unmasked stores); keep folding by
    #      powers of two up to 512 lanes while the row count stays divisible.
    #      gamma is tiled `fold` times so element (r, j) still sees gamma[j % dim].
    fold = 1
    if dim < 128 and 128 % dim == 0:
        k = 128 // dim
        if rows % k == 0:
            fold = k
            while dim * fold * 2 <= 512 and rows % (fold * 2) == 0:
                fold *= 2
    lane_dim = dim * fold
    rows_f = rows // fold
    x2 = x2.reshape(rows_f, lane_dim)
    gamma_lane = (jnp.tile(gamma, fold) if fold > 1 else gamma).reshape(1, lane_dim)

    # ---- row tile: target ~2 MiB per input block (double-buffered in+out stays
    #      well inside scoped VMEM on v5e/v6e/v7x), aligned to the dtype's
    #      sublane packing. No artificial row cap: bigger blocks amortize the
    #      ~0.35 us per-grid-step overhead for this mem-bound op.
    itemsize = jnp.dtype(x.dtype).itemsize
    sub = _sublane_multiple(x.dtype)
    target_bytes = 2 * 1024 * 1024
    row_tile = (target_bytes // (lane_dim * itemsize)) // sub * sub
    row_tile = max(sub, row_tile)
    if rows_f <= row_tile:
        # Single block: a full-extent block shape is always layout-legal.
        row_tile = rows_f
    grid = (pl.cdiv(rows_f, row_tile),)  # ragged last block is masked by Pallas

    out = pl.pallas_call(
        _layer_scale_kernel,
        out_shape=jax.ShapeDtypeStruct((rows_f, lane_dim), x.dtype),
        grid=grid,
        in_specs=[
            pl.BlockSpec((row_tile, lane_dim), lambda i: (i, 0)),
            pl.BlockSpec((1, lane_dim), lambda i: (0, 0)),
        ],
        out_specs=pl.BlockSpec((row_tile, lane_dim), lambda i: (i, 0)),
        compiler_params=pltpu.CompilerParams(
            # "parallel" lets v7x split the row grid across its 2 TensorCores.
            dimension_semantics=("parallel",),
            # Headroom for double-buffered large tiles on v5e's small default
            # scoped VMEM; stays comfortably under v7x's 64 MiB physical VMEM.
            vmem_limit_bytes=32 * 1024 * 1024,
        ),
    )(x2, gamma_lane)

    return out.reshape(orig_shape)


if __name__ == "__main__":
    key = jax.random.PRNGKey(0)

    batch, seq, dim = 2, 8, 32
    init_values = 1e-5

    # Deterministic parameter init, exactly like nn.Parameter(init_values * ones(dim))
    gamma = init_values * jnp.ones((dim,), dtype=jnp.float32)

    x = jax.random.normal(key, (batch, seq, dim), dtype=jnp.float32)

    y = layer_scale(x, gamma)
    y = jax.block_until_ready(y)

    # Reference check (plain JAX, same broadcasting as PyTorch x * gamma)
    y_ref = x * gamma
    assert y.shape == x.shape
    assert jnp.allclose(y, y_ref, atol=1e-7, rtol=1e-6)

    print("KERNEL_OK")
</pallas_src>

<mosaic_0001>
module attributes {stable_mosaic.version = 11 : i64} {
  func.func @_layer_scale_kernel(%arg0: i32, %arg1: memref<1x512xf32, #tpu.memory_space<vmem>>, %arg2: memref<1x512xf32, #tpu.memory_space<vmem>>, %arg3: memref<1x512xf32, #tpu.memory_space<vmem>>) attributes {dimension_semantics = [#tpu.dimension_semantics<parallel>], iteration_bounds = array<i64: 1>, scalar_prefetch = 0 : i64, scratch_operands = 0 : i64, tpu.core_type = #tpu.core_type<tc>, window_params = [{transform_indices = @transform_0, window_bounds = array<i64: 1, 512>}, {pipeline_mode = #tpu.pipeline_mode<synchronous>, transform_indices = @transform_1, window_bounds = array<i64: 1, 512>}, {transform_indices = @transform_2, window_bounds = array<i64: 1, 512>}]} {
    %c0 = arith.constant 0 : index
    %c0_0 = arith.constant 0 : index
    %0 = vector.load %arg1[%c0, %c0_0] : memref<1x512xf32, #tpu.memory_space<vmem>>, vector<1x512xf32>
    %c0_1 = arith.constant 0 : index
    %c0_2 = arith.constant 0 : index
    %1 = vector.load %arg2[%c0_1, %c0_2] : memref<1x512xf32, #tpu.memory_space<vmem>>, vector<1x512xf32>
    %2 = arith.mulf %0, %1 : vector<1x512xf32>
    %c0_3 = arith.constant 0 : index
    %c0_4 = arith.constant 0 : index
    %3 = vector.load %arg3[%c0_3, %c0_4] : memref<1x512xf32, #tpu.memory_space<vmem>>, vector<1x512xf32>
    tpu.vector_store %arg3[%c0_3, %c0_4], %2 {strides = array<i32>} : memref<1x512xf32, #tpu.memory_space<vmem>>, vector<1x512xf32>,
    return
  }
  func.func @transform_0(%arg0: i32) -> (i32, i32) {
    %c0_i32 = arith.constant 0 : i32
    %c0_i32_0 = arith.constant 0 : i32
    return %arg0, %c0_i32 : i32, i32
  }
  func.func @transform_1(%arg0: i32) -> (i32, i32) {
    %c0_i32 = arith.constant 0 : i32
    %c0_i32_0 = arith.constant 0 : i32
    %c0_i32_1 = arith.constant 0 : i32
    return %c0_i32, %c0_i32_0 : i32, i32
  }
  func.func @transform_2(%arg0: i32) -> (i32, i32) {
    %c0_i32 = arith.constant 0 : i32
    %c0_i32_0 = arith.constant 0 : i32
    return %arg0, %c0_i32 : i32, i32
  }
}

</mosaic_0001>

<llo_original>
// kernel: tpu_custom_call.1
$region0: #{tpu_custom_call.1}
  #allocation0 [shape = 'u32[]', space=smem, size = 0x4, offset = 0x4, fixed_abs, tag = 'smem constant byte address 0x4 - core index']
  #allocation1 [shape = 'u32[144,128]{1,0:T(1,128)}', space=vmem, size = 0x12000, scoped, tag = 'internal scratch']
  %s0 = inlined_call_operand.hbm [shape: f32[1,512], index: 0, kind: input, shape index: {}]
  %s1 = inlined_call_operand.hbm [shape: f32[1,512], index: 1, kind: input, shape index: {}]
  %s2 = inlined_call_operand.hbm [shape: f32[1,512], index: 2, kind: output, shape index: {}]
  %s3 = sld [smem:[#allocation0]]
  $region26: #{tpu_custom_call.1} parent=0
    _
  %s5 = ssub.s32 1, %s3
  %s6 = scalar_select 0, %s5, %s3
  $region1: #{tpu_custom_call.1} parent=0
    #allocation2 [shape = 'u8[2048]{0}', space=vmem, size = 0x800, scoped, tag = 'input window, operand 0, single buffered']
    #allocation3 [shape = 's32[1]{0}', space=sflag, size = 0x4, scoped, tag = 'scoped memory for tpu_custom_call.1']
    #allocation4 [shape = 's32[1]{0}', space=sflag, size = 0x4, scoped, tag = 'scoped memory for tpu_custom_call.1']
    #allocation5 [shape = 'u8[2048]{0}', space=vmem, size = 0x800, scoped, tag = 'input window, operand 1, single buffered']
    #allocation6 [shape = 's32[1]{0}', space=sflag, size = 0x4, scoped, tag = 'scoped memory for tpu_custom_call.1']
    #allocation7 [shape = 'u8[2048]{0}', space=vmem, size = 0x800, scoped, tag = 'output window, operand 0, single buffered']
    %7 = vsyncpa [#allocation3], 0
    %8 = vsyncpa [#allocation6], 0
    %9 = vsyncpa [#allocation4], 0
    // Predicated region
    $region2: #{tpu_custom_call.1} parent=1 // pred_check
      _
    $region3: #{tpu_custom_call.1} parent=1 // pred_check_branch
      %11 = sbr.rel (0) target = $region5
    $region4: #{tpu_custom_call.1} parent=1 // pred_region
      %s13 = ssub.s32 64, 64
      %14 = vsyncadd [#allocation3], %s13
      %s16 = sshll.u32 [#allocation2], 4
      %s17 = int_to_ptr.vmem [resolvable:$true] %s16
      %19 = dma.hbm_to_vmem [thread:$0]  %s0, 64, %s17, [#allocation3]
    $region5: #{tpu_custom_call.1} parent=1 // pred_fallthru
      _
    // Predicated region
    $region6: #{tpu_custom_call.1} parent=1 // pred_check
      _
    $region7: #{tpu_custom_call.1} parent=1 // pred_check_branch
      %21 = sbr.rel (0) target = $region9
    $region8: #{tpu_custom_call.1} parent=1 // pred_region
      %s23 = ssub.s32 64, 64
      %24 = vsyncadd [#allocation6], %s23
      %s26 = sshll.u32 [#allocation5], 4
      %s27 = int_to_ptr.vmem [resolvable:$true] %s26
      %29 = dma.hbm_to_vmem [thread:$0]  %s1, 64, %s27, [#allocation6]
    $region9: #{tpu_custom_call.1} parent=1 // pred_fallthru
      _
    // Predicated region
    $region10: #{tpu_custom_call.1} parent=1 // pred_check
      _
    $region11: #{tpu_custom_call.1} parent=1 // pred_check_branch
      %31 = sbr.rel (0) target = $region13
    $region12: #{tpu_custom_call.1} parent=1 // pred_region
      %32 = dma.done [#allocation3], 64
    $region13: #{tpu_custom_call.1} parent=1 // pred_fallthru
      _
    // Predicated region
    $region14: #{tpu_custom_call.1} parent=1 // pred_check
      _
    $region15: #{tpu_custom_call.1} parent=1 // pred_check_branch
      %34 = sbr.rel (0) target = $region17
    $region16: #{tpu_custom_call.1} parent=1 // pred_region
      %35 = dma.done [#allocation6], 64
    $region17: #{tpu_custom_call.1} parent=1 // pred_fallthru
      _
    %v36 = vld [vmem:[#allocation2] sm:$0xf]
    %v37 = vld [vmem:[#allocation5] sm:$0xf]
    %v38 = vmul.f32 %v36, %v37
    %v39 = vlaneseq
    %vm40 = vcmp.ge.s32.totalorder %v39, 0
    %vm41 = vcmp.lt.s32.totalorder %v39, 512
    %vm42 = vmand %vm40, %vm41
    %43 = vst.msk [vmem:[#allocation7] sm:$0xf] %vm42, %v38
    // Predicated region
    $region18: #{tpu_custom_call.1} parent=1 // pred_check
      _
    $region19: #{tpu_custom_call.1} parent=1 // pred_check_branch
      %45 = sbr.rel (0) target = $region21
    $region20: #{tpu_custom_call.1} parent=1 // pred_region
      %s47 = ssub.s32 64, 64
      %48 = vsyncadd [#allocation4], %s47
      %s50 = sshll.u32 [#allocation7], 4
      %s51 = int_to_ptr.vmem [resolvable:$true] %s50
      %53 = dma.vmem_to_hbm [thread:$0]  %s51, 64, %s2, [#allocation4]
    $region21: #{tpu_custom_call.1} parent=1 // pred_fallthru
      _
    // Predicated region
    $region22: #{tpu_custom_call.1} parent=1 // pred_check
      _
    $region23: #{tpu_custom_call.1} parent=1 // pred_check_branch
      %55 = sbr.rel (0) target = $region25
    $region24: #{tpu_custom_call.1} parent=1 // pred_region
      %56 = dma.done [#allocation4], 64
    $region25: #{tpu_custom_call.1} parent=1 // pred_fallthru
      _
    %57 = vsyncpa [#allocation3], 1
    %58 = vsyncpa [#allocation6], 1
    %59 = vsyncpa [#allocation4], 1

</llo_original>
